<compile_context>
chip_gen: v5e
topology: v5e:2x2
jax: 0.10.0
libtpu: 0.0.40
codegen_flags: <defaults>
</compile_context>

<pallas_src>
import math

import jax
import jax.numpy as jnp
from jax.experimental import pallas as pl
from jax.experimental.pallas import tpu as pltpu


# ----------------------------------------------------------------------------
# Kernel
# ----------------------------------------------------------------------------
def make_mlp_kernel(n_linear):
    """Fused kernel: n_linear Linear layers, tanh between them, log_softmax at
    the end.  Refs: (x, w1, b1, ..., wN, bN, out).  x / w_i are bf16 (MXU
    operands), b_i are f32, out is bf16."""

    def kernel(*refs):
        x_ref = refs[0]
        o_ref = refs[-1]

        a = x_ref[...]                                  # bf16 (TB, d_in)
        h = None
        for i in range(n_linear):
            w = refs[1 + 2 * i][...]                    # bf16 (Din, Dout_pad)
            b = refs[2 + 2 * i][...]                    # f32  (1, Dout_pad)
            # MXU matmul: bf16 operands, f32 accumulation.
            h = jnp.dot(a, w, preferred_element_type=jnp.float32) + b
            if i < n_linear - 1:
                # Elementwise in f32 (v5e has no bf16 VPU/EUP); cast to bf16
                # only at the next MXU call site.
                a = jnp.tanh(h).astype(jnp.bfloat16)

        # log_softmax along dim=1 (last axis), numerically stable.  Padded
        # logit lanes carry a -1e30 bias so exp() underflows to exactly 0 and
        # they do not perturb the row reduction.
        m = jnp.max(h, axis=-1, keepdims=True)
        s = h - m
        lse = jnp.log(jnp.sum(jnp.exp(s), axis=-1, keepdims=True))
        o_ref[...] = (s - lse).astype(o_ref.dtype)

    return kernel


# ----------------------------------------------------------------------------
# Wrapper
# ----------------------------------------------------------------------------
def _round_up(x, m):
    return ((x + m - 1) // m) * m


def _cdiv(a, b):
    return -(-a // b)


def _pad_to(x, shape):
    return jnp.pad(x, [(0, t - s) for s, t in zip(x.shape, shape)])


def _tensorcores_per_chip():
    """Best-effort TensorCore count per chip (v7x has 2, earlier gens have 1)."""
    try:
        kind = jax.devices()[0].device_kind.lower()
    except Exception:
        return 1
    return 2 if "v7" in kind else 1


def prepack_mlp_params(weights, biases):
    """One-time packing of PyTorch-layout params (done OUTSIDE the hot path):
    transpose to (in, out), lane-pad hidden/output dims to 128, cast to bf16,
    and bake the -1e30 mask for padded logit lanes into the last bias."""
    n_linear = len(weights)
    d_in = int(weights[0].shape[1])
    d_out = int(weights[-1].shape[0])
    dims = [d_in] + [int(w.shape[0]) for w in weights]
    # Input dim stays unpadded (MXU zero-pads K); hidden/output dims -> 128.
    pdims = [d_in] + [_round_up(d, 128) for d in dims[1:]]

    args = []
    for i, (w, b) in enumerate(zip(weights, biases)):
        w_t = jnp.asarray(w, jnp.float32).T                       # (in, out)
        w_p = _pad_to(w_t, (pdims[i], pdims[i + 1])).astype(jnp.bfloat16)
        b_p = _pad_to(jnp.asarray(b, jnp.float32).reshape(1, -1),
                      (1, pdims[i + 1]))
        if i == n_linear - 1 and pdims[i + 1] != dims[i + 1]:
            # Mask padded logit lanes out of the in-kernel log_softmax.
            lane = jnp.arange(pdims[i + 1])[None, :]
            b_p = jnp.where(lane < dims[i + 1], b_p, jnp.float32(-1e30))
        args.append(w_p)
        args.append(b_p)

    return {"args": args, "dims": dims, "pdims": pdims,
            "d_in": d_in, "d_out": d_out, "n_linear": n_linear}


def mlp_forward_pallas(x, packed, *, tb=None, num_cores=None):
    """x: (B, C, H, W) or (B, D).  packed: result of prepack_mlp_params.
    Returns f32 log_softmax logits of shape (B, d_out)."""
    d_in, d_out = packed["d_in"], packed["d_out"]
    dims, pdims = packed["dims"], packed["pdims"]
    n_linear = packed["n_linear"]

    # torch view(-1, D); cast to bf16 BEFORE padding (halves pad/copy bytes).
    x2d = jnp.asarray(x).reshape(-1, d_in).astype(jnp.bfloat16)
    B = x2d.shape[0]

    # Tile selection: number of grid steps first, then tb tracks B.
    #   * one step per TensorCore (2 on v7x, 1 on v5e/v6e) when B is big
    #     enough to split; never split tiny batches,
    #   * more steps only when a tile would exceed MAX_TB rows (per-step
    #     overhead ~0.35us; VMEM is nowhere near binding even at 2048 rows).
    if num_cores is None:
        num_cores = _tensorcores_per_chip()
    MAX_TB = 2048
    if tb is None:
        steps = max(1, min(num_cores, _cdiv(B, 16)))
        steps = max(steps, _cdiv(B, MAX_TB))
        tb = _round_up(_cdiv(B, steps), 16)      # multiple of 16: bf16 sublanes
    else:
        tb = _round_up(tb, 16)
        steps = _cdiv(B, tb)
    B_pad = tb * steps

    # Batch-pad only; feature dim stays unpadded (block last dim == full dim).
    x_p = _pad_to(x2d, (B_pad, d_in))
    args = [x_p] + list(packed["args"])

    in_specs = [pl.BlockSpec((tb, d_in), lambda i: (i, 0))]
    for li in range(n_linear):
        # Grid-invariant weight/bias blocks (constant block index).
        # pipeline_mode=pl.Buffered(1) would drop their unused second buffer,
        # but top-level-grid support for pipeline_mode varies; VMEM impact is
        # negligible here so it is intentionally omitted.
        in_specs.append(
            pl.BlockSpec((pdims[li], pdims[li + 1]), lambda i: (0, 0)))
        in_specs.append(
            pl.BlockSpec((1, pdims[li + 1]), lambda i: (0, 0)))
    out_spec = pl.BlockSpec((tb, pdims[-1]), lambda i: (i, 0))

    # Advisory cost estimate: real (unpadded) arithmetic, actual bytes moved.
    flops = 2 * B * sum(dims[i] * dims[i + 1] for i in range(n_linear))
    transcendentals = B * (sum(dims[1:-1]) + dims[-1])          # tanh + exp
    bytes_accessed = (
        int(x_p.size) * 2
        + sum(int(a.size) * a.dtype.itemsize for a in packed["args"])
        + B_pad * pdims[-1] * 2)

    out = pl.pallas_call(
        make_mlp_kernel(n_linear),
        out_shape=jax.ShapeDtypeStruct((B_pad, pdims[-1]), jnp.bfloat16),
        grid=(steps,),
        in_specs=in_specs,
        out_specs=out_spec,
        compiler_params=pltpu.CompilerParams(
            dimension_semantics=("parallel",)),
        cost_estimate=pl.CostEstimate(
            flops=flops,
            transcendentals=transcendentals,
            bytes_accessed=bytes_accessed),
    )(*args)

    return out[:B, :d_out].astype(jnp.float32)


# ----------------------------------------------------------------------------
# Init / reference
# ----------------------------------------------------------------------------
def init_linear_params(key, layer_sizes):
    """Deterministic nn.Linear-style init: U(-1/sqrt(fan_in), 1/sqrt(fan_in))."""
    weights, biases = [], []
    for i in range(1, len(layer_sizes)):
        fan_in, fan_out = layer_sizes[i - 1], layer_sizes[i]
        key, kw, kb = jax.random.split(key, 3)
        bound = 1.0 / math.sqrt(fan_in)
        w = jax.random.uniform(kw, (fan_out, fan_in), jnp.float32, -bound, bound)
        b = jax.random.uniform(kb, (fan_out,), jnp.float32, -bound, bound)
        weights.append(w)
        biases.append(b)
    return weights, biases


def reference_forward(x, weights, biases):
    """Pure-JAX f32 reference of the PyTorch forward (logsoftmaxF=1)."""
    d_in = weights[0].shape[1]
    h = jnp.asarray(x, jnp.float32).reshape(-1, d_in)
    n = len(weights)
    for i, (w, b) in enumerate(zip(weights, biases)):
        h = h @ w.T + b
        if i < n - 1:
            h = jnp.tanh(h)
    return jax.nn.log_softmax(h, axis=1)


# ----------------------------------------------------------------------------
# Main
# ----------------------------------------------------------------------------
if __name__ == "__main__":
    # Small synthetic config: n_layers=4, layer_sizes=[64, 32, 32, 10]
    # Input: NCHW (2, 1, 8, 8) -> flattened to (2, 64)
    layer_sizes = [64, 32, 32, 10]

    key = jax.random.PRNGKey(0)
    key, kx, kx2 = jax.random.split(key, 3)
    weights, biases = init_linear_params(key, layer_sizes)
    packed = prepack_mlp_params(weights, biases)          # one-time packing

    # --- small-batch check (single tile) ---
    x = jax.random.normal(kx, (2, 1, 8, 8), jnp.float32)
    out = jax.block_until_ready(mlp_forward_pallas(x, packed))
    ref = reference_forward(x, weights, biases)
    assert out.shape == (2, layer_sizes[-1])
    # bf16 MXU operands + bf16 output -> loosened tolerances vs f32 reference.
    assert jnp.allclose(out, ref, atol=5e-2, rtol=5e-2), "mismatch vs reference"
    assert jnp.allclose(jnp.exp(out).sum(axis=1), 1.0, atol=1e-2)

    # --- larger-batch check (exercises multi-step / padded-batch handling) ---
    x2 = jax.random.normal(kx2, (600, 1, 8, 8), jnp.float32)
    out2 = jax.block_until_ready(mlp_forward_pallas(x2, packed))
    ref2 = reference_forward(x2, weights, biases)
    assert out2.shape == (600, layer_sizes[-1])
    assert jnp.allclose(out2, ref2, atol=5e-2, rtol=5e-2), "mismatch (batch=600)"
    assert jnp.allclose(jnp.exp(out2).sum(axis=1), 1.0, atol=1e-2)

    print("KERNEL_OK")
</pallas_src>

<mosaic_0001>
module attributes {stable_mosaic.version = 11 : i64} {
  func.func @kernel(%arg0: i32, %arg1: memref<16x64xbf16, #tpu.memory_space<vmem>>, %arg2: memref<64x128xbf16, #tpu.memory_space<vmem>>, %arg3: memref<1x128xf32, #tpu.memory_space<vmem>>, %arg4: memref<128x128xbf16, #tpu.memory_space<vmem>>, %arg5: memref<1x128xf32, #tpu.memory_space<vmem>>, %arg6: memref<128x128xbf16, #tpu.memory_space<vmem>>, %arg7: memref<1x128xf32, #tpu.memory_space<vmem>>, %arg8: memref<16x128xbf16, #tpu.memory_space<vmem>>) attributes {dimension_semantics = [#tpu.dimension_semantics<parallel>], iteration_bounds = array<i64: 1>, scalar_prefetch = 0 : i64, scratch_operands = 0 : i64, tpu.core_type = #tpu.core_type<tc>, window_params = [{transform_indices = @transform_0, window_bounds = array<i64: 16, 64>}, {pipeline_mode = #tpu.pipeline_mode<synchronous>, transform_indices = @transform_1, window_bounds = array<i64: 64, 128>}, {pipeline_mode = #tpu.pipeline_mode<synchronous>, transform_indices = @transform_2, window_bounds = array<i64: 1, 128>}, {pipeline_mode = #tpu.pipeline_mode<synchronous>, transform_indices = @transform_3, window_bounds = array<i64: 128, 128>}, {pipeline_mode = #tpu.pipeline_mode<synchronous>, transform_indices = @transform_4, window_bounds = array<i64: 1, 128>}, {pipeline_mode = #tpu.pipeline_mode<synchronous>, transform_indices = @transform_5, window_bounds = array<i64: 128, 128>}, {pipeline_mode = #tpu.pipeline_mode<synchronous>, transform_indices = @transform_6, window_bounds = array<i64: 1, 128>}, {transform_indices = @transform_7, window_bounds = array<i64: 16, 128>}]} {
    %c0 = arith.constant 0 : index
    %c0_0 = arith.constant 0 : index
    %0 = vector.load %arg1[%c0, %c0_0] : memref<16x64xbf16, #tpu.memory_space<vmem>>, vector<16x64xbf16>
    %c0_1 = arith.constant 0 : index
    %c0_2 = arith.constant 0 : index
    %1 = vector.load %arg2[%c0_1, %c0_2] : memref<64x128xbf16, #tpu.memory_space<vmem>>, vector<64x128xbf16>
    %c0_3 = arith.constant 0 : index
    %c0_4 = arith.constant 0 : index
    %2 = vector.load %arg3[%c0_3, %c0_4] : memref<1x128xf32, #tpu.memory_space<vmem>>, vector<1x128xf32>
    %cst = arith.constant dense<0.000000e+00> : vector<16x128xf32>
    %3 = tpu.matmul %0, %1, %cst {dimension_numbers = #tpu.dot_dimension_numbers<[1], [0], [0], [1], [0, 0, 1, 1], [], []>} : vector<16x64xbf16>, vector<64x128xbf16>, vector<16x128xf32> -> vector<16x128xf32>
    %4 = vector.broadcast %2 : vector<1x128xf32> to vector<16x128xf32>
    %5 = arith.addf %3, %4 : vector<16x128xf32>
    %6 = math.tanh %5 : vector<16x128xf32>
    %7 = arith.truncf %6 : vector<16x128xf32> to vector<16x128xbf16>
    %c0_5 = arith.constant 0 : index
    %c0_6 = arith.constant 0 : index
    %8 = vector.load %arg4[%c0_5, %c0_6] : memref<128x128xbf16, #tpu.memory_space<vmem>>, vector<128x128xbf16>
    %c0_7 = arith.constant 0 : index
    %c0_8 = arith.constant 0 : index
    %9 = vector.load %arg5[%c0_7, %c0_8] : memref<1x128xf32, #tpu.memory_space<vmem>>, vector<1x128xf32>
    %cst_9 = arith.constant dense<0.000000e+00> : vector<16x128xf32>
    %10 = tpu.matmul %7, %8, %cst_9 {dimension_numbers = #tpu.dot_dimension_numbers<[1], [0], [0], [1], [0, 0, 1, 1], [], []>} : vector<16x128xbf16>, vector<128x128xbf16>, vector<16x128xf32> -> vector<16x128xf32>
    %11 = vector.broadcast %9 : vector<1x128xf32> to vector<16x128xf32>
    %12 = arith.addf %10, %11 : vector<16x128xf32>
    %13 = math.tanh %12 : vector<16x128xf32>
    %14 = arith.truncf %13 : vector<16x128xf32> to vector<16x128xbf16>
    %c0_10 = arith.constant 0 : index
    %c0_11 = arith.constant 0 : index
    %15 = vector.load %arg6[%c0_10, %c0_11] : memref<128x128xbf16, #tpu.memory_space<vmem>>, vector<128x128xbf16>
    %c0_12 = arith.constant 0 : index
    %c0_13 = arith.constant 0 : index
    %16 = vector.load %arg7[%c0_12, %c0_13] : memref<1x128xf32, #tpu.memory_space<vmem>>, vector<1x128xf32>
    %cst_14 = arith.constant dense<0.000000e+00> : vector<16x128xf32>
    %17 = tpu.matmul %14, %15, %cst_14 {dimension_numbers = #tpu.dot_dimension_numbers<[1], [0], [0], [1], [0, 0, 1, 1], [], []>} : vector<16x128xbf16>, vector<128x128xbf16>, vector<16x128xf32> -> vector<16x128xf32>
    %18 = vector.broadcast %16 : vector<1x128xf32> to vector<16x128xf32>
    %19 = arith.addf %17, %18 : vector<16x128xf32>
    %cst_15 = arith.constant dense<0xFF800000> : vector<16xf32>
    %20 = vector.multi_reduction <maximumf>, %19, %cst_15 [1] : vector<16x128xf32> to vector<16xf32>
    %21 = vector.shape_cast %20 : vector<16xf32> to vector<16x1xf32>
    %22 = vector.broadcast %21 : vector<16x1xf32> to vector<16x128xf32>
    %23 = arith.subf %19, %22 : vector<16x128xf32>
    %24 = math.exp %23 : vector<16x128xf32>
    %cst_16 = arith.constant dense<0.000000e+00> : vector<16xf32>
    %25 = vector.multi_reduction <add>, %24, %cst_16 [1] : vector<16x128xf32> to vector<16xf32>
    %26 = vector.shape_cast %25 : vector<16xf32> to vector<16x1xf32>
    %27 = math.log %26 : vector<16x1xf32>
    %28 = vector.broadcast %27 : vector<16x1xf32> to vector<16x128xf32>
    %29 = arith.subf %23, %28 : vector<16x128xf32>
    %30 = arith.truncf %29 : vector<16x128xf32> to vector<16x128xbf16>
    %c0_17 = arith.constant 0 : index
    %c0_18 = arith.constant 0 : index
    %31 = vector.load %arg8[%c0_17, %c0_18] : memref<16x128xbf16, #tpu.memory_space<vmem>>, vector<16x128xbf16>
    tpu.vector_store %arg8[%c0_17, %c0_18], %30 {strides = array<i32>} : memref<16x128xbf16, #tpu.memory_space<vmem>>, vector<16x128xbf16>,
    return
  }
  func.func @transform_0(%arg0: i32) -> (i32, i32) {
    %c0_i32 = arith.constant 0 : i32
    %c0_i32_0 = arith.constant 0 : i32
    return %arg0, %c0_i32 : i32, i32
  }
  func.func @transform_1(%arg0: i32) -> (i32, i32) {
    %c0_i32 = arith.constant 0 : i32
    %c0_i32_0 = arith.constant 0 : i32
    %c0_i32_1 = arith.constant 0 : i32
    return %c0_i32, %c0_i32_0 : i32, i32
  }
  func.func @transform_2(%arg0: i32) -> (i32, i32) {
    %c0_i32 = arith.constant 0 : i32
    %c0_i32_0 = arith.constant 0 : i32
    %c0_i32_1 = arith.constant 0 : i32
    return %c0_i32, %c0_i32_0 : i32, i32
  }
  func.func @transform_3(%arg0: i32) -> (i32, i32) {
    %c0_i32 = arith.constant 0 : i32
    %c0_i32_0 = arith.constant 0 : i32
    %c0_i32_1 = arith.constant 0 : i32
    return %c0_i32, %c0_i32_0 : i32, i32
  }
  func.func @transform_4(%arg0: i32) -> (i32, i32) {
    %c0_i32 = arith.constant 0 : i32
    %c0_i32_0 = arith.constant 0 : i32
    %c0_i32_1 = arith.constant 0 : i32
    return %c0_i32, %c0_i32_0 : i32, i32
  }
  func.func @transform_5(%arg0: i32) -> (i32, i32) {
    %c0_i32 = arith.constant 0 : i32
    %c0_i32_0 = arith.constant 0 : i32
    %c0_i32_1 = arith.constant 0 : i32
    return %c0_i32, %c0_i32_0 : i32, i32
  }
  func.func @transform_6(%arg0: i32) -> (i32, i32) {
    %c0_i32 = arith.constant 0 : i32
    %c0_i32_0 = arith.constant 0 : i32
    %c0_i32_1 = arith.constant 0 : i32
    return %c0_i32, %c0_i32_0 : i32, i32
  }
  func.func @transform_7(%arg0: i32) -> (i32, i32) {
    %c0_i32 = arith.constant 0 : i32
    %c0_i32_0 = arith.constant 0 : i32
    return %arg0, %c0_i32 : i32, i32
  }
}

</mosaic_0001>

<llo_original>
// kernel: tpu_custom_call.1
$region0: #{tpu_custom_call.1}
  #allocation0 [shape = 'u32[]', space=smem, size = 0x4, offset = 0x4, fixed_abs, tag = 'smem constant byte address 0x4 - core index']
  #allocation1 [shape = 'u32[72,128]{1,0:T(1,128)}', space=vmem, size = 0x9000, scoped, tag = 'internal scratch']
  %s0 = inlined_call_operand.hbm [shape: bf16[16,64], index: 0, kind: input, shape index: {}]
  %s1 = inlined_call_operand.hbm [shape: bf16[64,128], index: 1, kind: input, shape index: {}]
  %s2 = inlined_call_operand.vmem [shape: f32[1,128], index: 2, kind: input, shape index: {}]
  %s3 = inlined_call_operand.hbm [shape: bf16[128,128], index: 3, kind: input, shape index: {}]
  %s4 = inlined_call_operand.vmem [shape: f32[1,128], index: 4, kind: input, shape index: {}]
  %s5 = inlined_call_operand.hbm [shape: bf16[128,128], index: 5, kind: input, shape index: {}]
  %s6 = inlined_call_operand.vmem [shape: f32[1,128], index: 6, kind: input, shape index: {}]
  %s7 = inlined_call_operand.hbm [shape: bf16[16,128], index: 7, kind: output, shape index: {}]
  %s8 = sld [smem:[#allocation0]]
  $region54: #{tpu_custom_call.1} parent=0
    _
  %s10 = ssub.s32 1, %s8
  %s11 = scalar_select 0, %s10, %s8
  $region1: #{tpu_custom_call.1} parent=0
    #allocation2 [shape = 'u8[4096]{0}', space=vmem, size = 0x1000, scoped, tag = 'input window, operand 0, single buffered']
    #allocation3 [shape = 's32[1]{0}', space=sflag, size = 0x4, scoped, tag = 'scoped memory for tpu_custom_call.1']
    #allocation4 [shape = 's32[1]{0}', space=sflag, size = 0x4, scoped, tag = 'scoped memory for tpu_custom_call.1']
    #allocation5 [shape = 'u8[16384]{0}', space=vmem, size = 0x4000, scoped, tag = 'input window, operand 1, single buffered']
    #allocation6 [shape = 's32[1]{0}', space=sflag, size = 0x4, scoped, tag = 'scoped memory for tpu_custom_call.1']
    #allocation7 [shape = 'u8[32768]{0}', space=vmem, size = 0x8000, scoped, tag = 'input window, operand 3, single buffered']
    #allocation8 [shape = 'u8[32768]{0}', space=vmem, size = 0x8000, scoped, tag = 'input window, operand 5, single buffered']
    #allocation9 [shape = 's32[1]{0}', space=sflag, size = 0x4, scoped, tag = 'scoped memory for tpu_custom_call.1']
    #allocation10 [shape = 'u8[4096]{0}', space=vmem, size = 0x1000, scoped, tag = 'output window, operand 0, single buffered']
    %12 = vsyncpa [#allocation3], 0
    %13 = vsyncpa [#allocation6], 0
    %14 = vsyncpa [#allocation9], 0
    %15 = vsyncpa [#allocation4], 0
    // Predicated region
    $region2: #{tpu_custom_call.1} parent=1 // pred_check
      _
    $region3: #{tpu_custom_call.1} parent=1 // pred_check_branch
      %17 = sbr.rel (0) target = $region5
    $region4: #{tpu_custom_call.1} parent=1 // pred_region
      %19 = vsyncadd [#allocation3], 0
      %s20 = sshll.u32 %s0, 4
      %s21 = int_to_ptr.hbm [resolvable:$true] %s20
      %s22 = sshll.u32 [#allocation2], 4
      %s23 = int_to_ptr.vmem [resolvable:$true] %s22
      %28 = dma.hbm_to_vmem [thread:$0]  %s21, 128, %s23, [#allocation3], 64, 64, 4
    $region5: #{tpu_custom_call.1} parent=1 // pred_fallthru
      _
    // Predicated region
    $region6: #{tpu_custom_call.1} parent=1 // pred_check
      _
    $region7: #{tpu_custom_call.1} parent=1 // pred_check_branch
      %30 = sbr.rel (0) target = $region9
    $region8: #{tpu_custom_call.1} parent=1 // pred_region
      %32 = vsyncadd [#allocation6], 0
      %s33 = sshll.u32 %s1, 4
      %s34 = int_to_ptr.hbm [resolvable:$true] %s33
      %s35 = sshll.u32 [#allocation5], 4
      %s36 = int_to_ptr.vmem [resolvable:$true] %s35
      %41 = dma.hbm_to_vmem [thread:$0]  %s34, 512, %s36, [#allocation6], 64, 64, 4
    $region9: #{tpu_custom_call.1} parent=1 // pred_fallthru
      _
    // Predicated region
    $region10: #{tpu_custom_call.1} parent=1 // pred_check
      _
    $region11: #{tpu_custom_call.1} parent=1 // pred_check_branch
      %43 = sbr.rel (0) target = $region13
    $region12: #{tpu_custom_call.1} parent=1 // pred_region
      _
    $region13: #{tpu_custom_call.1} parent=1 // pred_fallthru
      _
    // Predicated region
    $region14: #{tpu_custom_call.1} parent=1 // pred_check
      _
    $region15: #{tpu_custom_call.1} parent=1 // pred_check_branch
      %45 = sbr.rel (0) target = $region17
    $region16: #{tpu_custom_call.1} parent=1 // pred_region
      %47 = vsyncadd [#allocation6], 0
      %s48 = sshll.u32 %s3, 4
      %s49 = int_to_ptr.hbm [resolvable:$true] %s48
      %s50 = sshll.u32 [#allocation7], 4
      %s51 = int_to_ptr.vmem [resolvable:$true] %s50
      %56 = dma.hbm_to_vmem [thread:$0]  %s49, 1024, %s51, [#allocation6], 64, 64, 4
    $region17: #{tpu_custom_call.1} parent=1 // pred_fallthru
      _
    // Predicated region
    $region18: #{tpu_custom_call.1} parent=1 // pred_check
      _
    $region19: #{tpu_custom_call.1} parent=1 // pred_check_branch
      %58 = sbr.rel (0) target = $region21
    $region20: #{tpu_custom_call.1} parent=1 // pred_region
      _
    $region21: #{tpu_custom_call.1} parent=1 // pred_fallthru
      _
    // Predicated region
    $region22: #{tpu_custom_call.1} parent=1 // pred_check
      _
    $region23: #{tpu_custom_call.1} parent=1 // pred_check_branch
      %60 = sbr.rel (0) target = $region25
    $region24: #{tpu_custom_call.1} parent=1 // pred_region
      %62 = vsyncadd [#allocation9], 0
      %s63 = sshll.u32 %s5, 4
      %s64 = int_to_ptr.hbm [resolvable:$true] %s63
      %s65 = sshll.u32 [#allocation8], 4
      %s66 = int_to_ptr.vmem [resolvable:$true] %s65
      %71 = dma.hbm_to_vmem [thread:$0]  %s64, 1024, %s66, [#allocation9], 64, 64, 4
    $region25: #{tpu_custom_call.1} parent=1 // pred_fallthru
      _
    // Predicated region
    $region26: #{tpu_custom_call.1} parent=1 // pred_check
      _
    $region27: #{tpu_custom_call.1} parent=1 // pred_check_branch
      %73 = sbr.rel (0) target = $region29
    $region28: #{tpu_custom_call.1} parent=1 // pred_region
      _
    $region29: #{tpu_custom_call.1} parent=1 // pred_fallthru
      _
    // Predicated region
    $region30: #{tpu_custom_call.1} parent=1 // pred_check
      _
    $region31: #{tpu_custom_call.1} parent=1 // pred_check_branch
      %75 = sbr.rel (0) target = $region33
    $region32: #{tpu_custom_call.1} parent=1 // pred_region
      %77 = dma.done [#allocation3], 128
    $region33: #{tpu_custom_call.1} parent=1 // pred_fallthru
      _
    // Predicated region
    $region34: #{tpu_custom_call.1} parent=1 // pred_check
      _
    $region35: #{tpu_custom_call.1} parent=1 // pred_check_branch
      %79 = sbr.rel (0) target = $region37
    $region36: #{tpu_custom_call.1} parent=1 // pred_region
      %81 = dma.done [#allocation6], 512
    $region37: #{tpu_custom_call.1} parent=1 // pred_fallthru
      _
    // Predicated region
    $region38: #{tpu_custom_call.1} parent=1 // pred_check
      _
    $region39: #{tpu_custom_call.1} parent=1 // pred_check_branch
      %83 = sbr.rel (0) target = $region41
    $region40: #{tpu_custom_call.1} parent=1 // pred_region
      %85 = dma.done [#allocation6], 1024
    $region41: #{tpu_custom_call.1} parent=1 // pred_fallthru
      _
    // Predicated region
    $region42: #{tpu_custom_call.1} parent=1 // pred_check
      _
    $region43: #{tpu_custom_call.1} parent=1 // pred_check_branch
      %87 = sbr.rel (0) target = $region45
    $region44: #{tpu_custom_call.1} parent=1 // pred_region
      %89 = dma.done [#allocation9], 1024
    $region45: #{tpu_custom_call.1} parent=1 // pred_fallthru
      _
    %v91 = vld [vmem:[#allocation2] sm:$0xf]
    %v92 = vld [vmem:[#allocation2 + $0x4] sm:$0xf]
    %v93 = vld [vmem:[#allocation5] sm:$0xf]
    %v94 = vld [vmem:[#allocation5 + $0x4] sm:$0xf]
    %v95 = vld [vmem:[#allocation5 + $0x8] sm:$0xf]
    %v96 = vld [vmem:[#allocation5 + $0xc] sm:$0xf]
    %v97 = vld [vmem:[#allocation5 + $0x10] sm:$0xf]
    %v98 = vld [vmem:[#allocation5 + $0x14] sm:$0xf]
    %v99 = vld [vmem:[#allocation5 + $0x18] sm:$0xf]
    %v100 = vld [vmem:[#allocation5 + $0x1c] sm:$0xf]
    %v101 = vld [vmem:[%s2] sm:$0x1]
    %v103 = vperm.slane %v101, 0
    %v107 = vunpack.c.l.b16 %v91
    %v108 = vunpack.c.l.b16 %v92
    %v109 = vpack.c.b16 %v108, %v107
    %v118 = vunpack.c.l.b16 %v93
    %v119 = vunpack.c.l.b16 %v94
    %v120 = vunpack.c.l.b16 %v95
    %v121 = vunpack.c.l.b16 %v96
    %v122 = vunpack.c.l.b16 %v97
    %v123 = vunpack.c.l.b16 %v98
    %v124 = vunpack.c.l.b16 %v99
    %v125 = vunpack.c.l.b16 %v100
    %v126 = vpack.c.b16 %v119, %v118
    %v127 = vpack.c.b16 %v121, %v120
    %v128 = vpack.c.b16 %v123, %v122
    %v129 = vpack.c.b16 %v125, %v124
    %vm134 = vcmask 523264
    %v136 = vsel %vm134, %v109, 0
    %138 = vmatpush.bf16.msra.mxu0 0
    %139 = vmatpush.bf16.msra.mxu0 0
    %140 = vmatpush.bf16.msra.mxu0 0
    %141 = vmatpush.bf16.msra.mxu0 0
    %142 = vmatpush.bf16.msra.mxu0 %v129
    %143 = vmatpush.bf16.msra.mxu0 %v128
    %144 = vmatpush.bf16.msra.mxu0 %v127
    %145 = vmatpush.bf16.msra.mxu0 %v126
    %146 = vmatmul.bf16.gmra.mxu0 %v136
    %v147 = vpop.f32.mrf.mxu0
    %v148 = vadd.f32 %v103, %v147
    %v149 = vpop.f32.mrf.mxu0
    %v150 = vadd.f32 %v103, %v149
    %151 = vdwg.mxu0
    %v152 = vtanh.pop %v148
    %v153 = vtanh.pop %v150
    %v154 = vpack.c.bf16 %v153, %v152
    %v155 = vld [vmem:[#allocation7] sm:$0xf]
    %v156 = vld [vmem:[#allocation7 + $0x4] sm:$0xf]
    %v157 = vld [vmem:[#allocation7 + $0x8] sm:$0xf]
    %v158 = vld [vmem:[#allocation7 + $0xc] sm:$0xf]
    %v159 = vld [vmem:[#allocation7 + $0x10] sm:$0xf]
    %v160 = vld [vmem:[#allocation7 + $0x14] sm:$0xf]
    %v161 = vld [vmem:[#allocation7 + $0x18] sm:$0xf]
    %v162 = vld [vmem:[#allocation7 + $0x1c] sm:$0xf]
    %v163 = vld [vmem:[#allocation7 + $0x20] sm:$0xf]
    %v164 = vld [vmem:[#allocation7 + $0x24] sm:$0xf]
    %v165 = vld [vmem:[#allocation7 + $0x28] sm:$0xf]
    %v166 = vld [vmem:[#allocation7 + $0x2c] sm:$0xf]
    %v167 = vld [vmem:[#allocation7 + $0x30] sm:$0xf]
    %v168 = vld [vmem:[#allocation7 + $0x34] sm:$0xf]
    %v169 = vld [vmem:[#allocation7 + $0x38] sm:$0xf]
    %v170 = vld [vmem:[#allocation7 + $0x3c] sm:$0xf]
    %v171 = vld [vmem:[%s4] sm:$0x1]
    %v173 = vperm.slane %v171, 0
    %v191 = vunpack.c.l.b16 %v155
    %v192 = vunpack.c.l.b16 %v156
    %v193 = vunpack.c.l.b16 %v157
    %v194 = vunpack.c.l.b16 %v158
    %v195 = vunpack.c.l.b16 %v159
    %v196 = vunpack.c.l.b16 %v160
    %v197 = vunpack.c.l.b16 %v161
    %v198 = vunpack.c.l.b16 %v162
    %v199 = vunpack.c.l.b16 %v163
    %v200 = vunpack.c.l.b16 %v164
    %v201 = vunpack.c.l.b16 %v165
    %v202 = vunpack.c.l.b16 %v166
    %v203 = vunpack.c.l.b16 %v167
    %v204 = vunpack.c.l.b16 %v168
    %v205 = vunpack.c.l.b16 %v169
    %v206 = vunpack.c.l.b16 %v170
    %v207 = vpack.c.b16 %v192, %v191
    %v208 = vpack.c.b16 %v194, %v193
    %v209 = vpack.c.b16 %v196, %v195
    %v210 = vpack.c.b16 %v198, %v197
    %v211 = vpack.c.b16 %v200, %v199
    %v212 = vpack.c.b16 %v202, %v201
    %v213 = vpack.c.b16 %v204, %v203
    %v214 = vpack.c.b16 %v206, %v205
    %223 = vmatpush.bf16.msra.mxu0 %v214
    %224 = vmatpush.bf16.msra.mxu0 %v213
    %225 = vmatpush.bf16.msra.mxu0 %v212
    %226 = vmatpush.bf16.msra.mxu0 %v211
    %227 = vmatpush.bf16.msra.mxu0 %v210
    %228 = vmatpush.bf16.msra.mxu0 %v209
    %229 = vmatpush.bf16.msra.mxu0 %v208
    %230 = vmatpush.bf16.msra.mxu0 %v207
    %231 = vmatmul.bf16.gmra.mxu0 %v154
    %v232 = vpop.f32.mrf.mxu0
    %v233 = vadd.f32 %v173, %v232
    %v234 = vpop.f32.mrf.mxu0
    %v235 = vadd.f32 %v173, %v234
    %236 = vdwg.mxu0
    %v237 = vtanh.pop %v233
    %v238 = vtanh.pop %v235
    %v239 = vpack.c.bf16 %v238, %v237
    %v240 = vld [vmem:[#allocation8] sm:$0xf]
    %v241 = vld [vmem:[#allocation8 + $0x4] sm:$0xf]
    %v242 = vld [vmem:[#allocation8 + $0x8] sm:$0xf]
    %v243 = vld [vmem:[#allocation8 + $0xc] sm:$0xf]
    %v244 = vld [vmem:[#allocation8 + $0x10] sm:$0xf]
    %v245 = vld [vmem:[#allocation8 + $0x14] sm:$0xf]
    %v246 = vld [vmem:[#allocation8 + $0x18] sm:$0xf]
    %v247 = vld [vmem:[#allocation8 + $0x1c] sm:$0xf]
    %v248 = vld [vmem:[#allocation8 + $0x20] sm:$0xf]
    %v249 = vld [vmem:[#allocation8 + $0x24] sm:$0xf]
    %v250 = vld [vmem:[#allocation8 + $0x28] sm:$0xf]
    %v251 = vld [vmem:[#allocation8 + $0x2c] sm:$0xf]
    %v252 = vld [vmem:[#allocation8 + $0x30] sm:$0xf]
    %v253 = vld [vmem:[#allocation8 + $0x34] sm:$0xf]
    %v254 = vld [vmem:[#allocation8 + $0x38] sm:$0xf]
    %v255 = vld [vmem:[#allocation8 + $0x3c] sm:$0xf]
    %v256 = vld [vmem:[%s6] sm:$0x1]
    %v258 = vperm.slane %v256, 0
    %v276 = vunpack.c.l.b16 %v240
    %v277 = vunpack.c.l.b16 %v241
    %v278 = vunpack.c.l.b16 %v242
    %v279 = vunpack.c.l.b16 %v243
    %v280 = vunpack.c.l.b16 %v244
    %v281 = vunpack.c.l.b16 %v245
    %v282 = vunpack.c.l.b16 %v246
    %v283 = vunpack.c.l.b16 %v247
    %v284 = vunpack.c.l.b16 %v248
    %v285 = vunpack.c.l.b16 %v249
    %v286 = vunpack.c.l.b16 %v250
    %v287 = vunpack.c.l.b16 %v251
    %v288 = vunpack.c.l.b16 %v252
    %v289 = vunpack.c.l.b16 %v253
    %v290 = vunpack.c.l.b16 %v254
    %v291 = vunpack.c.l.b16 %v255
    %v292 = vpack.c.b16 %v277, %v276
    %v293 = vpack.c.b16 %v279, %v278
    %v294 = vpack.c.b16 %v281, %v280
    %v295 = vpack.c.b16 %v283, %v282
    %v296 = vpack.c.b16 %v285, %v284
    %v297 = vpack.c.b16 %v287, %v286
    %v298 = vpack.c.b16 %v289, %v288
    %v299 = vpack.c.b16 %v291, %v290
    %308 = vmatpush.bf16.msra.mxu0 %v299
    %309 = vmatpush.bf16.msra.mxu0 %v298
    %310 = vmatpush.bf16.msra.mxu0 %v297
    %311 = vmatpush.bf16.msra.mxu0 %v296
    %312 = vmatpush.bf16.msra.mxu0 %v295
    %313 = vmatpush.bf16.msra.mxu0 %v294
    %314 = vmatpush.bf16.msra.mxu0 %v293
    %315 = vmatpush.bf16.msra.mxu0 %v292
    %316 = vmatmul.bf16.gmra.mxu0 %v239
    %v317 = vpop.f32.mrf.mxu0
    %v318 = vadd.f32 %v258, %v317
    %v319 = vpop.f32.mrf.mxu0
    %v320 = vadd.f32 %v258, %v319
    %321 = vdwg.mxu0
    %322 = vmax.xlane.f32.xlu0 %v318
    %v323 = vpop.xlane.xlu0 %322
    %324 = vmax.xlane.f32.xlu0 %v320
    %v325 = vpop.xlane.xlu0 %324
    %v326 = vsub.f32 %v318, %v323
    %v327 = vsub.f32 %v320, %v325
    %v328 = vmul.f32 %v326, 1.442695
    %v329 = vpow.pop %v328
    %v330 = vmul.f32 %v327, 1.442695
    %v331 = vpow.pop %v330
    %332 = vadd.xlane.f32.xlu0 %v329
    %v333 = vpop.xlane.xlu0 %332
    %334 = vadd.xlane.f32.xlu0 %v331
    %v335 = vpop.xlane.xlu0 %334
    %v336 = vlog2.pop %v333
    %v337 = vmul.f32 %v336, 0.6931472
    %v338 = vlog2.pop %v335
    %v339 = vmul.f32 %v338, 0.6931472
    %v340 = vsub.f32 %v326, %v337
    %v341 = vsub.f32 %v327, %v339
    %v342 = vpack.c.bf16 %v340, %v340
    %v343 = vpack.c.bf16 %v341, %v341
    %344 = vst [vmem:[#allocation10] sm:$0xf] %v342
    %345 = vst [vmem:[#allocation10 + $0x4] sm:$0xf] %v343
    // Predicated region
    $region46: #{tpu_custom_call.1} parent=1 // pred_check
      _
    $region47: #{tpu_custom_call.1} parent=1 // pred_check_branch
      %347 = sbr.rel (0) target = $region49
    $region48: #{tpu_custom_call.1} parent=1 // pred_region
      %349 = vsyncadd [#allocation4], 0
      %s350 = sshll.u32 [#allocation10], 4
      %s351 = int_to_ptr.vmem [resolvable:$true] %s350
      %s352 = sshll.u32 %s7, 4
      %s353 = int_to_ptr.hbm [resolvable:$true] %s352
      %358 = dma.vmem_to_hbm [thread:$0]  %s351, 128, %s353, [#allocation4], 64, 64, 4
    $region49: #{tpu_custom_call.1} parent=1 // pred_fallthru
      _
    // Predicated region
    $region50: #{tpu_custom_call.1} parent=1 // pred_check
      _
    $region51: #{tpu_custom_call.1} parent=1 // pred_check_branch
      %360 = sbr.rel (0) target = $region53
    $region52: #{tpu_custom_call.1} parent=1 // pred_region
      %362 = dma.done [#allocation4], 128
    $region53: #{tpu_custom_call.1} parent=1 // pred_fallthru
      _
    %363 = vsyncpa [#allocation3], 1
    %364 = vsyncpa [#allocation6], 1
    %365 = vsyncpa [#allocation9], 1
    %366 = vsyncpa [#allocation4], 1

</llo_original>
